<compile_context>
chip_gen: v7x
topology: tpu7x:2x2x1
jax: 0.10.0
libtpu: 0.0.40
codegen_flags: <defaults>
</compile_context>

<pallas_src>
import functools

import numpy as np
import jax
import jax.numpy as jnp
from jax import lax
from jax.experimental import pallas as pl
from jax.experimental.pallas import tpu as pltpu

_LB = 128   # one 128-lane block per gate group (r / z / n)


def _fe_kernel(xin_ref, A_ref, whhT_ref, bhh_ref, out_ref,
               gi_scr, of_scr, ob_scr, *, B, H_pad, H_out, h2):
    # ------------------------------------------------------------------
    # Fused affine prefix: one lane-dense matmul produces every input gate.
    # gi layout: lanes [0:128)=r, [128:256)=z, [256:384)=n.  Within each
    # block: fwd gates at lanes [0:h2) (time s), bwd gates at lanes [h2:2h2)
    # (time B-1-s, inputs pre-reversed host-side).  All biases are folded in
    # via an indicator column, so padded lanes/rows of A contribute nothing.
    # ------------------------------------------------------------------
    gi_scr[...] = jnp.dot(xin_ref[...], A_ref[...],
                          preferred_element_type=jnp.float32)

    whhT = whhT_ref[...]        # (128, 384) block-diagonal fwd/bwd hidden proj
    bhh = bhh_ref[...]          # (1, 384)   hidden biases, same gate layout
    inv_h = 1.0 / H_out

    # Fused hidden state: lanes [0:h2)=h_f, [h2:2h2)=h_b, other lanes stay 0.
    h = jnp.zeros((H_pad, _LB), jnp.float32)

    # B is a small static constant -> fully unroll the serial recurrence so
    # step s+1's hidden matmul can issue under step s's gate math.
    for s in range(B):
        gi = gi_scr[s * H_pad:(s + 1) * H_pad, :]                 # (H_pad, 384)
        gh = jnp.dot(h, whhT, preferred_element_type=jnp.float32) + bhh
        r = jax.nn.sigmoid(gi[:, 0:_LB] + gh[:, 0:_LB])
        z = jax.nn.sigmoid(gi[:, _LB:2 * _LB] + gh[:, _LB:2 * _LB])
        n = jnp.tanh(gi[:, 2 * _LB:3 * _LB] + r * gh[:, 2 * _LB:3 * _LB])
        h = (1.0 - z) * n + z * h
        # Per-timestep mean over the valid H_out GRU-batch rows (XLU sublane
        # reduce, off the recurrence chain).  fwd half belongs to time s,
        # bwd half to original time B-1-s.
        red = jnp.sum(h[0:H_out, :], axis=0, keepdims=True) * inv_h   # (1,128)
        of_scr[s:s + 1, :] = red
        ob_scr[B - 1 - s:B - s, :] = red

    # Single full-width output store: fwd half from of_scr, bwd from ob_scr.
    lane = lax.broadcasted_iota(jnp.int32, (B, 2 * h2), 1)
    out_ref[...] = jnp.where(lane < h2,
                             of_scr[0:B, 0:2 * h2],
                             ob_scr[0:B, 0:2 * h2])


def init_params(key, out_dim):
    h2 = out_dim // 2
    ks = jax.random.split(key, 11)
    return dict(
        emb=jax.random.normal(ks[0], (5, 123), jnp.float32),
        conv_w=0.2 * jax.random.normal(ks[1], (3, 5), jnp.float32),
        conv_b=0.1 * jax.random.normal(ks[2], (1,), jnp.float32),
        wih_f=0.1 * jax.random.normal(ks[3], (3 * h2, 40), jnp.float32),
        whh_f=0.1 * jax.random.normal(ks[4], (3 * h2, h2), jnp.float32),
        bih_f=0.1 * jax.random.normal(ks[5], (3 * h2,), jnp.float32),
        bhh_f=0.1 * jax.random.normal(ks[6], (3 * h2,), jnp.float32),
        wih_b=0.1 * jax.random.normal(ks[7], (3 * h2, 40), jnp.float32),
        whh_b=0.1 * jax.random.normal(ks[8], (3 * h2, h2), jnp.float32),
        bih_b=0.1 * jax.random.normal(ks[9], (3 * h2,), jnp.float32),
        bhh_b=0.1 * jax.random.normal(ks[10], (3 * h2,), jnp.float32),
    )


@functools.partial(jax.jit, static_argnums=(2,))
def feature_extractor_forward(x, p, out_dim):
    B, one, L, T = x.shape
    assert one == 1 and T == 5 and out_dim % 2 == 0
    h2 = out_dim // 2
    g3 = 3 * h2
    assert 2 * h2 <= _LB, "gate packing assumes out_dim <= 128"
    H_out = (L - 3) // 3 + 1            # conv output rows (kernel 3, stride 3)
    W_out = (123 - 5) // 3 + 1          # == 40, the GRU input size
    H_pad = ((H_out + 7) // 8) * 8      # sublane-align the GRU batch dim
    B_scr = ((B + 7) // 8) * 8          # sublane-align the per-step scratches
    K = 32                              # [fwd 15 | pad | bwd 15 | const 1]

    E = p["emb"].astype(jnp.float32)                 # (5, 123)
    W = p["conv_w"].astype(jnp.float32)              # (3, 5)
    cbias = p["conv_b"].astype(jnp.float32)[0]

    # Embedding-table patches seen by the conv: Ep[c, j, kw] = E[c, 3*j + kw]
    col_idx = 3 * np.arange(W_out)[:, None] + np.arange(5)[None, :]   # (40, 5)
    Ep = E[:, col_idx]                                                # (5, 40, 5)

    def fuse_direction(wih, bih):
        wih = wih.astype(jnp.float32)
        bih = bih.astype(jnp.float32)
        # A[kh*5 + c, g] = sum_{j,kw} Ep[c,j,kw] * W[kh,kw] * wih[g,j]
        A = jnp.einsum('cjk,hk,gj->hcg', Ep, W, wih).reshape(15, g3)
        b = cbias * jnp.sum(wih, axis=1) + bih       # conv bias + GRU input bias
        return A, b

    A_f, b_f = fuse_direction(p["wih_f"], p["bih_f"])
    A_b, b_b = fuse_direction(p["wih_b"], p["bih_b"])

    def scatter_gates(dst, row0, src, off):
        """Place (R, 3*h2) gate data into 128-lane-aligned r/z/n blocks."""
        R = src.shape[0]
        for g in range(3):
            dst = dst.at[row0:row0 + R,
                         g * _LB + off:g * _LB + off + h2].set(
                             src[:, g * h2:(g + 1) * h2])
        return dst

    # Fused input-projection matrix (biases folded via the indicator column).
    A_all = jnp.zeros((K, 3 * _LB), jnp.float32)
    A_all = scatter_gates(A_all, 0, A_f, 0)                  # fwd patches
    A_all = scatter_gates(A_all, 16, A_b, h2)                # bwd (reversed) patches
    A_all = scatter_gates(A_all, K - 1, b_f[None, :], 0)     # fwd gi bias
    A_all = scatter_gates(A_all, K - 1, b_b[None, :], h2)    # bwd gi bias

    # Block-diagonal hidden projection + hidden biases, same gate layout.
    whhT_blk = jnp.zeros((_LB, 3 * _LB), jnp.float32)
    whhT_blk = scatter_gates(whhT_blk, 0, p["whh_f"].astype(jnp.float32).T, 0)
    whhT_blk = scatter_gates(whhT_blk, h2, p["whh_b"].astype(jnp.float32).T, h2)
    bhh_blk = jnp.zeros((1, 3 * _LB), jnp.float32)
    bhh_blk = scatter_gates(bhh_blk, 0, p["bhh_f"].astype(jnp.float32)[None, :], 0)
    bhh_blk = scatter_gates(bhh_blk, 0, p["bhh_b"].astype(jnp.float32)[None, :], h2)

    # One-hot rows regrouped per conv output row:
    #   xin[(b,i), kh*5+c] = x[b, 0, 3*i+kh, c]
    xin = x[:, 0, :3 * H_out, :].reshape(B, H_out, 15).astype(jnp.float32)
    xin2 = jnp.zeros((B, H_pad, K), jnp.float32)
    xin2 = xin2.at[:, :H_out, 0:15].set(xin)
    xin2 = xin2.at[:, :H_out, 16:31].set(xin[::-1])      # time-reversed (bwd dir)
    xin2 = xin2.at[:, :H_out, K - 1].set(1.0)            # bias indicator (valid rows)
    xin2 = xin2.reshape(B * H_pad, K)

    vmem = pl.BlockSpec(memory_space=pltpu.MemorySpace.VMEM)
    kernel = functools.partial(_fe_kernel, B=B, H_pad=H_pad, H_out=H_out, h2=h2)
    out = pl.pallas_call(
        kernel,
        out_shape=jax.ShapeDtypeStruct((B, 2 * h2), jnp.float32),
        in_specs=[vmem] * 4,
        out_specs=vmem,
        scratch_shapes=[
            pltpu.VMEM((B * H_pad, 3 * _LB), jnp.float32),   # fused input gates
            pltpu.VMEM((B_scr, _LB), jnp.float32),           # per-step fwd means
            pltpu.VMEM((B_scr, _LB), jnp.float32),           # per-step bwd means
        ],
    )(xin2, A_all, whhT_blk, bhh_blk)
    return out


# ----------------------- pure-numpy reference (torch semantics) -----------------------
def _sigmoid(v):
    return 1.0 / (1.0 + np.exp(-v))


def reference_forward(x, p, out_dim):
    B, _, L, T = x.shape
    h2 = out_dim // 2
    idx = x.argmax(-1)[:, 0, :]                       # nonzero()[:, -1] on one-hot
    emb = p["emb"][idx]                               # (B, L, 123)
    W = p["conv_w"]; bias = float(p["conv_b"][0])
    H_out = (L - 3) // 3 + 1
    W_out = (123 - 5) // 3 + 1
    conv = np.zeros((B, H_out, W_out), np.float32)
    for i in range(H_out):
        for j in range(W_out):
            patch = emb[:, 3 * i:3 * i + 3, 3 * j:3 * j + 5]
            conv[:, i, j] = (patch * W[None]).sum(axis=(1, 2)) + bias

    def run(rev, wih, whh, bih, bhh):
        h = np.zeros((H_out, h2), np.float32)
        outs = [None] * B
        order = range(B - 1, -1, -1) if rev else range(B)
        for t in order:
            xt = conv[t]
            gi = xt @ wih.T + bih
            gh = h @ whh.T + bhh
            r = _sigmoid(gi[:, :h2] + gh[:, :h2])
            z = _sigmoid(gi[:, h2:2 * h2] + gh[:, h2:2 * h2])
            n = np.tanh(gi[:, 2 * h2:] + r * gh[:, 2 * h2:])
            h = (1 - z) * n + z * h
            outs[t] = h
        return np.stack(outs)                         # (B, H_out, h2)

    of = run(False, p["wih_f"], p["whh_f"], p["bih_f"], p["bhh_f"])
    ob = run(True,  p["wih_b"], p["whh_b"], p["bih_b"], p["bhh_b"])
    return np.concatenate([of, ob], axis=-1).mean(axis=1).reshape(-1, 2 * h2)


if __name__ == "__main__":
    out_dim = 16          # -> hidden_size_2 = 8, final_l = 16
    B, L = 2, 12          # DNA length 12, type = 5 -> H_out = 4

    key = jax.random.PRNGKey(0)
    k_idx, k_par = jax.random.split(key)
    idx = jax.random.randint(k_idx, (B, 1, L), 0, 5)
    x = jax.nn.one_hot(idx, 5, dtype=jnp.float32)     # (B, 1, L, 5) one-hot DNA

    params = init_params(k_par, out_dim)

    out = feature_extractor_forward(x, params, out_dim)
    out = jax.block_until_ready(out)

    ref = reference_forward(np.asarray(x),
                            {k: np.asarray(v) for k, v in params.items()},
                            out_dim)
    assert out.shape == (B, out_dim)
    np.testing.assert_allclose(np.asarray(out), ref, rtol=2e-3, atol=2e-3)
    print("KERNEL_OK")
</pallas_src>

<mosaic_0001>
module attributes {stable_mosaic.version = 11 : i64} {
  func.func @_fe_kernel(%arg0: memref<16x32xf32, #tpu.memory_space<vmem>>, %arg1: memref<32x384xf32, #tpu.memory_space<vmem>>, %arg2: memref<128x384xf32, #tpu.memory_space<vmem>>, %arg3: memref<1x384xf32, #tpu.memory_space<vmem>>, %arg4: memref<2x16xf32, #tpu.memory_space<vmem>>, %arg5: memref<16x384xf32, #tpu.memory_space<vmem>>, %arg6: memref<8x128xf32, #tpu.memory_space<vmem>>, %arg7: memref<8x128xf32, #tpu.memory_space<vmem>>) attributes {dimension_semantics = [], scalar_prefetch = 0 : i64, scratch_operands = 3 : i64, tpu.core_type = #tpu.core_type<tc>} {
    %c0 = arith.constant 0 : index
    %c0_0 = arith.constant 0 : index
    %0 = vector.load %arg0[%c0, %c0_0] : memref<16x32xf32, #tpu.memory_space<vmem>>, vector<16x32xf32>
    %c0_1 = arith.constant 0 : index
    %c0_2 = arith.constant 0 : index
    %1 = vector.load %arg1[%c0_1, %c0_2] : memref<32x384xf32, #tpu.memory_space<vmem>>, vector<32x384xf32>
    %cst = arith.constant dense<0.000000e+00> : vector<16x384xf32>
    %2 = tpu.matmul %0, %1, %cst {dimension_numbers = #tpu.dot_dimension_numbers<[1], [0], [0], [1], [0, 0, 1, 1], [], []>} : vector<16x32xf32>, vector<32x384xf32>, vector<16x384xf32> -> vector<16x384xf32>
    %c0_3 = arith.constant 0 : index
    %c0_4 = arith.constant 0 : index
    %3 = vector.load %arg5[%c0_3, %c0_4] : memref<16x384xf32, #tpu.memory_space<vmem>>, vector<16x384xf32>
    tpu.vector_store %arg5[%c0_3, %c0_4], %2 {strides = array<i32>} : memref<16x384xf32, #tpu.memory_space<vmem>>, vector<16x384xf32>,
    %c0_5 = arith.constant 0 : index
    %c0_6 = arith.constant 0 : index
    %4 = vector.load %arg2[%c0_5, %c0_6] : memref<128x384xf32, #tpu.memory_space<vmem>>, vector<128x384xf32>
    %c0_7 = arith.constant 0 : index
    %c0_8 = arith.constant 0 : index
    %5 = vector.load %arg3[%c0_7, %c0_8] : memref<1x384xf32, #tpu.memory_space<vmem>>, vector<1x384xf32>
    %cst_9 = arith.constant 0.000000e+00 : f32
    %6 = vector.broadcast %cst_9 : f32 to vector<8x128xf32>
    %c0_10 = arith.constant 0 : index
    %c0_11 = arith.constant 0 : index
    %7 = vector.load %arg5[%c0_10, %c0_11] : memref<16x384xf32, #tpu.memory_space<vmem>>, vector<8x384xf32>
    %cst_12 = arith.constant dense<0.000000e+00> : vector<8x384xf32>
    %8 = tpu.matmul %6, %4, %cst_12 {dimension_numbers = #tpu.dot_dimension_numbers<[1], [0], [0], [1], [0, 0, 1, 1], [], []>} : vector<8x128xf32>, vector<128x384xf32>, vector<8x384xf32> -> vector<8x384xf32>
    %9 = vector.broadcast %5 : vector<1x384xf32> to vector<8x384xf32>
    %10 = arith.addf %8, %9 : vector<8x384xf32>
    %11 = vector.extract_strided_slice %7 {offsets = [0, 0], sizes = [8, 128], strides = [1, 1]} : vector<8x384xf32> to vector<8x128xf32>
    %12 = vector.extract_strided_slice %10 {offsets = [0, 0], sizes = [8, 128], strides = [1, 1]} : vector<8x384xf32> to vector<8x128xf32>
    %13 = arith.addf %11, %12 : vector<8x128xf32>
    %14 = arith.negf %13 : vector<8x128xf32>
    %15 = math.exp %14 : vector<8x128xf32>
    %cst_13 = arith.constant 1.000000e+00 : f32
    %16 = vector.broadcast %cst_13 : f32 to vector<8x128xf32>
    %17 = arith.addf %16, %15 : vector<8x128xf32>
    %18 = arith.divf %16, %17 : vector<8x128xf32>
    %19 = vector.extract_strided_slice %7 {offsets = [0, 128], sizes = [8, 128], strides = [1, 1]} : vector<8x384xf32> to vector<8x128xf32>
    %20 = vector.extract_strided_slice %10 {offsets = [0, 128], sizes = [8, 128], strides = [1, 1]} : vector<8x384xf32> to vector<8x128xf32>
    %21 = arith.addf %19, %20 : vector<8x128xf32>
    %22 = arith.negf %21 : vector<8x128xf32>
    %23 = math.exp %22 : vector<8x128xf32>
    %cst_14 = arith.constant 1.000000e+00 : f32
    %24 = vector.broadcast %cst_14 : f32 to vector<8x128xf32>
    %25 = arith.addf %24, %23 : vector<8x128xf32>
    %26 = arith.divf %24, %25 : vector<8x128xf32>
    %27 = vector.extract_strided_slice %7 {offsets = [0, 256], sizes = [8, 128], strides = [1, 1]} : vector<8x384xf32> to vector<8x128xf32>
    %28 = vector.extract_strided_slice %10 {offsets = [0, 256], sizes = [8, 128], strides = [1, 1]} : vector<8x384xf32> to vector<8x128xf32>
    %29 = arith.mulf %18, %28 : vector<8x128xf32>
    %30 = arith.addf %27, %29 : vector<8x128xf32>
    %31 = math.tanh %30 : vector<8x128xf32>
    %cst_15 = arith.constant 1.000000e+00 : f32
    %32 = vector.broadcast %cst_15 : f32 to vector<8x128xf32>
    %33 = arith.subf %32, %26 : vector<8x128xf32>
    %34 = arith.mulf %33, %31 : vector<8x128xf32>
    %35 = arith.mulf %26, %6 : vector<8x128xf32>
    %36 = arith.addf %34, %35 : vector<8x128xf32>
    %37 = vector.extract_strided_slice %36 {offsets = [0, 0], sizes = [4, 128], strides = [1, 1]} : vector<8x128xf32> to vector<4x128xf32>
    %cst_16 = arith.constant dense<0.000000e+00> : vector<128xf32>
    %38 = vector.multi_reduction <add>, %37, %cst_16 [0] : vector<4x128xf32> to vector<128xf32>
    %39 = vector.shape_cast %38 : vector<128xf32> to vector<1x128xf32>
    %cst_17 = arith.constant 2.500000e-01 : f32
    %40 = vector.broadcast %cst_17 : f32 to vector<1x128xf32>
    %41 = arith.mulf %39, %40 : vector<1x128xf32>
    %c0_18 = arith.constant 0 : index
    %c0_19 = arith.constant 0 : index
    %42 = vector.load %arg6[%c0_18, %c0_19] : memref<8x128xf32, #tpu.memory_space<vmem>>, vector<1x128xf32>
    tpu.vector_store %arg6[%c0_18, %c0_19], %41 {strides = array<i32>} : memref<8x128xf32, #tpu.memory_space<vmem>>, vector<1x128xf32>,
    %c1 = arith.constant 1 : index
    %c0_20 = arith.constant 0 : index
    %43 = vector.load %arg7[%c1, %c0_20] : memref<8x128xf32, #tpu.memory_space<vmem>>, vector<1x128xf32>
    tpu.vector_store %arg7[%c1, %c0_20], %41 {strides = array<i32>} : memref<8x128xf32, #tpu.memory_space<vmem>>, vector<1x128xf32>,
    %c8 = arith.constant 8 : index
    %c0_21 = arith.constant 0 : index
    %44 = vector.load %arg5[%c8, %c0_21] : memref<16x384xf32, #tpu.memory_space<vmem>>, vector<8x384xf32>
    %cst_22 = arith.constant dense<0.000000e+00> : vector<8x384xf32>
    %45 = tpu.matmul %36, %4, %cst_22 {dimension_numbers = #tpu.dot_dimension_numbers<[1], [0], [0], [1], [0, 0, 1, 1], [], []>} : vector<8x128xf32>, vector<128x384xf32>, vector<8x384xf32> -> vector<8x384xf32>
    %46 = vector.broadcast %5 : vector<1x384xf32> to vector<8x384xf32>
    %47 = arith.addf %45, %46 : vector<8x384xf32>
    %48 = vector.extract_strided_slice %44 {offsets = [0, 0], sizes = [8, 128], strides = [1, 1]} : vector<8x384xf32> to vector<8x128xf32>
    %49 = vector.extract_strided_slice %47 {offsets = [0, 0], sizes = [8, 128], strides = [1, 1]} : vector<8x384xf32> to vector<8x128xf32>
    %50 = arith.addf %48, %49 : vector<8x128xf32>
    %51 = arith.negf %50 : vector<8x128xf32>
    %52 = math.exp %51 : vector<8x128xf32>
    %cst_23 = arith.constant 1.000000e+00 : f32
    %53 = vector.broadcast %cst_23 : f32 to vector<8x128xf32>
    %54 = arith.addf %53, %52 : vector<8x128xf32>
    %55 = arith.divf %53, %54 : vector<8x128xf32>
    %56 = vector.extract_strided_slice %44 {offsets = [0, 128], sizes = [8, 128], strides = [1, 1]} : vector<8x384xf32> to vector<8x128xf32>
    %57 = vector.extract_strided_slice %47 {offsets = [0, 128], sizes = [8, 128], strides = [1, 1]} : vector<8x384xf32> to vector<8x128xf32>
    %58 = arith.addf %56, %57 : vector<8x128xf32>
    %59 = arith.negf %58 : vector<8x128xf32>
    %60 = math.exp %59 : vector<8x128xf32>
    %cst_24 = arith.constant 1.000000e+00 : f32
    %61 = vector.broadcast %cst_24 : f32 to vector<8x128xf32>
    %62 = arith.addf %61, %60 : vector<8x128xf32>
    %63 = arith.divf %61, %62 : vector<8x128xf32>
    %64 = vector.extract_strided_slice %44 {offsets = [0, 256], sizes = [8, 128], strides = [1, 1]} : vector<8x384xf32> to vector<8x128xf32>
    %65 = vector.extract_strided_slice %47 {offsets = [0, 256], sizes = [8, 128], strides = [1, 1]} : vector<8x384xf32> to vector<8x128xf32>
    %66 = arith.mulf %55, %65 : vector<8x128xf32>
    %67 = arith.addf %64, %66 : vector<8x128xf32>
    %68 = math.tanh %67 : vector<8x128xf32>
    %cst_25 = arith.constant 1.000000e+00 : f32
    %69 = vector.broadcast %cst_25 : f32 to vector<8x128xf32>
    %70 = arith.subf %69, %63 : vector<8x128xf32>
    %71 = arith.mulf %70, %68 : vector<8x128xf32>
    %72 = arith.mulf %63, %36 : vector<8x128xf32>
    %73 = arith.addf %71, %72 : vector<8x128xf32>
    %74 = vector.extract_strided_slice %73 {offsets = [0, 0], sizes = [4, 128], strides = [1, 1]} : vector<8x128xf32> to vector<4x128xf32>
    %cst_26 = arith.constant dense<0.000000e+00> : vector<128xf32>
    %75 = vector.multi_reduction <add>, %74, %cst_26 [0] : vector<4x128xf32> to vector<128xf32>
    %76 = vector.shape_cast %75 : vector<128xf32> to vector<1x128xf32>
    %cst_27 = arith.constant 2.500000e-01 : f32
    %77 = vector.broadcast %cst_27 : f32 to vector<1x128xf32>
    %78 = arith.mulf %76, %77 : vector<1x128xf32>
    %c1_28 = arith.constant 1 : index
    %c0_29 = arith.constant 0 : index
    %79 = vector.load %arg6[%c1_28, %c0_29] : memref<8x128xf32, #tpu.memory_space<vmem>>, vector<1x128xf32>
    tpu.vector_store %arg6[%c1_28, %c0_29], %78 {strides = array<i32>} : memref<8x128xf32, #tpu.memory_space<vmem>>, vector<1x128xf32>,
    %c0_30 = arith.constant 0 : index
    %c0_31 = arith.constant 0 : index
    %80 = vector.load %arg7[%c0_30, %c0_31] : memref<8x128xf32, #tpu.memory_space<vmem>>, vector<1x128xf32>
    tpu.vector_store %arg7[%c0_30, %c0_31], %78 {strides = array<i32>} : memref<8x128xf32, #tpu.memory_space<vmem>>, vector<1x128xf32>,
    %81 = tpu.iota {dimensions = array<i32: 1>} : vector<2x16xi32>
    %c8_i32 = arith.constant 8 : i32
    %82 = vector.broadcast %c8_i32 : i32 to vector<2x16xi32>
    %83 = arith.cmpi slt, %81, %82 : vector<2x16xi32>
    %c0_32 = arith.constant 0 : index
    %c0_33 = arith.constant 0 : index
    %84 = vector.load %arg6[%c0_32, %c0_33] : memref<8x128xf32, #tpu.memory_space<vmem>>, vector<2x16xf32>
    %c0_34 = arith.constant 0 : index
    %c0_35 = arith.constant 0 : index
    %85 = vector.load %arg7[%c0_34, %c0_35] : memref<8x128xf32, #tpu.memory_space<vmem>>, vector<2x16xf32>
    %86 = arith.select %83, %84, %85 : vector<2x16xi1>, vector<2x16xf32>
    %c0_36 = arith.constant 0 : index
    %c0_37 = arith.constant 0 : index
    %87 = vector.load %arg4[%c0_36, %c0_37] : memref<2x16xf32, #tpu.memory_space<vmem>>, vector<2x16xf32>
    tpu.vector_store %arg4[%c0_36, %c0_37], %86 {strides = array<i32>} : memref<2x16xf32, #tpu.memory_space<vmem>>, vector<2x16xf32>,
    return
  }
}

</mosaic_0001>

<llo_original>
// kernel: feature_extractor_forward.1
$region0: #{feature_extractor_forward.1}
  #allocation0 [shape = 'u32[]', space=smem, size = 0x4, offset = 0x4, fixed_abs, tag = 'smem constant byte address 0x4 - core index']
  #allocation1 [shape = 'u32[144,128]{1,0:T(1,128)}', space=vmem, size = 0x12000, scoped, tag = 'internal scratch']
  #allocation2 [shape = 'f32[16,384]{1,0:T(8,128)}', space=vmem, size = 0x6000, scoped, tag = 'scratch operand']
  #allocation3 [shape = 'f32[8,128]{1,0:T(8,128)}', space=vmem, size = 0x1000, scoped, tag = 'scratch operand']
  #allocation4 [shape = 'f32[8,128]{1,0:T(8,128)}', space=vmem, size = 0x1000, scoped, tag = 'scratch operand']
  %s0 = inlined_call_operand.vmem [shape: f32[16,32], index: 0, kind: input, shape index: {}]
  %s1 = inlined_call_operand.vmem [shape: f32[32,384], index: 1, kind: input, shape index: {}]
  %s2 = inlined_call_operand.vmem [shape: f32[128,384], index: 2, kind: input, shape index: {}]
  %s3 = inlined_call_operand.vmem [shape: f32[1,384], index: 3, kind: input, shape index: {}]
  %s4 = inlined_call_operand.hbm [shape: f32[2,16], index: 4, kind: output, shape index: {}]
  %s5 = sld [smem:[#allocation0]]
  $region26: #{feature_extractor_forward.1} parent=0
    _
  %s7 = ssub.s32 1, %s5
  %s8 = scalar_select 0, %s7, %s5
  $region1: #{feature_extractor_forward.1} parent=0
    #allocation5 [shape = 'u8[1024]{0}', space=vmem, size = 0x400, scoped, tag = 'output window, operand 0, single buffered']
    #allocation6 [shape = 's32[1]{0}', space=sflag, size = 0x4, scoped, tag = 'scoped memory for feature_extractor_forward.1']
    %9 = vsyncpa [#allocation6], 0
    // Predicated region
    $region2: #{feature_extractor_forward.1} parent=1 // pred_check
      _
    $region3: #{feature_extractor_forward.1} parent=1 // pred_check_branch
      %11 = sbr.rel (0) target = $region5
    $region4: #{feature_extractor_forward.1} parent=1 // pred_region
      _
    $region5: #{feature_extractor_forward.1} parent=1 // pred_fallthru
      _
    // Predicated region
    $region6: #{feature_extractor_forward.1} parent=1 // pred_check
      _
    $region7: #{feature_extractor_forward.1} parent=1 // pred_check_branch
      %13 = sbr.rel (0) target = $region9
    $region8: #{feature_extractor_forward.1} parent=1 // pred_region
      _
    $region9: #{feature_extractor_forward.1} parent=1 // pred_fallthru
      _
    // Predicated region
    $region10: #{feature_extractor_forward.1} parent=1 // pred_check
      _
    $region11: #{feature_extractor_forward.1} parent=1 // pred_check_branch
      %15 = sbr.rel (0) target = $region13
    $region12: #{feature_extractor_forward.1} parent=1 // pred_region
      _
    $region13: #{feature_extractor_forward.1} parent=1 // pred_fallthru
      _
    // Predicated region
    $region14: #{feature_extractor_forward.1} parent=1 // pred_check
      _
    $region15: #{feature_extractor_forward.1} parent=1 // pred_check_branch
      %17 = sbr.rel (0) target = $region17
    $region16: #{feature_extractor_forward.1} parent=1 // pred_region
      _
    $region17: #{feature_extractor_forward.1} parent=1 // pred_fallthru
      _
    %v18 = vld [vmem:[%s0] sm:$0xff]
    %v19 = vld [vmem:[%s0 + $0x8] sm:$0xff]
    %v20 = vld [vmem:[%s1] sm:$0xff]
    %v21 = vld [vmem:[%s1 + $0x8] sm:$0xff]
    %v22 = vld [vmem:[%s1 + $0x10] sm:$0xff]
    %v23 = vld [vmem:[%s1 + $0x18] sm:$0xff]
    %v24 = vld [vmem:[%s1 + $0x20] sm:$0xff]
    %v25 = vld [vmem:[%s1 + $0x28] sm:$0xff]
    %v26 = vld [vmem:[%s1 + $0x30] sm:$0xff]
    %v27 = vld [vmem:[%s1 + $0x38] sm:$0xff]
    %v28 = vld [vmem:[%s1 + $0x40] sm:$0xff]
    %v29 = vld [vmem:[%s1 + $0x48] sm:$0xff]
    %v30 = vld [vmem:[%s1 + $0x50] sm:$0xff]
    %v31 = vld [vmem:[%s1 + $0x58] sm:$0xff]
    %vm32 = vcmask 261120
    %v34 = vsel %vm32, %v18, 0
    %v37 = vsel %vm32, %v19, 0
    %39 = vmatprep.subr.mxu0 %v21
    %40 = vmatpush1.msra.mxu0 %v20
    %41 = vmatprep.subr.mxu0 %v24
    %42 = vmatpush1.msra.mxu0 %v23
    %43 = vmatprep.subr.mxu0 %v27
    %44 = vmatpush1.msra.mxu0 %v26
    %45 = vmatprep.subr.mxu0 %v30
    %46 = vmatpush1.msra.mxu0 %v29
    %47 = vmatprep.subr.mxu0 0.0
    %48 = vmatpush1.msra.mxu0 0.0
    %49 = vmatprep.subr.mxu0 0.0
    %50 = vmatpush1.msra.mxu0 0.0
    %51 = vmatprep.subr.mxu0 0.0
    %52 = vmatpush1.msra.mxu0 0.0
    %53 = vmatprep.subr.mxu0 0.0
    %54 = vmatpush1.msra.mxu0 0.0
    %55 = vmatprep.subr.mxu0 0.0
    %56 = vmatpush1.msra.mxu0 0.0
    %57 = vmatprep.subr.mxu0 0.0
    %58 = vmatpush1.msra.mxu0 0.0
    %59 = vmatprep.subr.mxu0 0.0
    %60 = vmatpush1.msra.mxu0 0.0
    %61 = vmatprep.subr.mxu0 0.0
    %62 = vmatpush1.msra.mxu0 0.0
    %63 = vmatprep.subr.mxu0 0.0
    %64 = vmatpush1.msra.mxu0 0.0
    %65 = vmatprep.subr.mxu0 0.0
    %66 = vmatpush1.msra.mxu0 0.0
    %67 = vmatprep.subr.mxu0 0.0
    %68 = vmatpush1.msra.mxu0 0.0
    %69 = vmatprep.subr.mxu0 0.0
    %70 = vmatpush1.msra.mxu0 0.0
    %71 = vmatprep.subr.mxu0 0.0
    %72 = vmatpush1.msra.mxu0 0.0
    %73 = vmatprep.subr.mxu0 0.0
    %74 = vmatpush1.msra.mxu0 0.0
    %75 = vmatprep.subr.mxu0 0.0
    %76 = vmatpush1.msra.mxu0 0.0
    %77 = vmatprep.subr.mxu0 0.0
    %78 = vmatpush1.msra.mxu0 0.0
    %79 = vmatprep.subr.mxu0 0.0
    %80 = vmatpush1.msra.mxu0 0.0
    %81 = vmatprep.subr.mxu0 0.0
    %82 = vmatpush1.msra.mxu0 0.0
    %83 = vmatprep.subr.mxu0 0.0
    %84 = vmatpush1.msra.mxu0 0.0
    %85 = vmatprep.subr.mxu0 0.0
    %86 = vmatpush1.msra.mxu0 0.0
    %87 = vmatprep.subr.mxu0 0.0
    %88 = vmatpush1.msra.mxu0 0.0
    %89 = vmatprep.subr.mxu0 0.0
    %90 = vmatpush1.msra.mxu0 0.0
    %91 = vmatprep.subr.mxu0 0.0
    %92 = vmatpush1.msra.mxu0 0.0
    %93 = vmatprep.subr.mxu0 0.0
    %94 = vmatpush1.msra.mxu0 0.0
    %95 = vmatprep.subr.mxu0 0.0
    %96 = vmatpush1.msra.mxu0 0.0
    %97 = vmatprep.subr.mxu0 0.0
    %98 = vmatpush1.msra.mxu0 0.0
    %99 = vmatprep.subr.mxu0 0.0
    %100 = vmatpush1.msra.mxu0 0.0
    %101 = vmatprep.subr.mxu0 0.0
    %102 = vmatpush1.msra.mxu0 0.0
    %103 = vmatprep.mubr.f32.mxu0 0.0
    %104 = vmatmul.mubr.f32.gmra.mrb[0].mxu0 %v34
    %v105 = vpop.f32.mrb[0].mxu0
    %v106 = vadd.f32 0.0, %v105
    %v107 = vpop.f32.mrb[0].mxu0
    %v108 = vadd.f32 0.0, %v107
    %109 = vmatprep.mubr.f32.mxu0 0.0
    %110 = vmatmul.mubr.f32.gmra.mrb[0].mxu0 %v37
    %v111 = vpop.f32.mrb[0].mxu0
    %v112 = vadd.f32 0.0, %v111
    %v113 = vpop.f32.mrb[0].mxu0
    %v114 = vadd.f32 0.0, %v113
    %115 = vdwg.mxu0
    %116 = vmatprep.subr.mxu0 0.0
    %117 = vmatpush1.msra.mxu0 %v22
    %118 = vmatprep.subr.mxu0 0.0
    %119 = vmatpush1.msra.mxu0 %v25
    %120 = vmatprep.subr.mxu0 0.0
    %121 = vmatpush1.msra.mxu0 %v28
    %122 = vmatprep.subr.mxu0 0.0
    %123 = vmatpush1.msra.mxu0 %v31
    %124 = vmatprep.subr.mxu0 0.0
    %125 = vmatpush1.msra.mxu0 0.0
    %126 = vmatprep.subr.mxu0 0.0
    %127 = vmatpush1.msra.mxu0 0.0
    %128 = vmatprep.subr.mxu0 0.0
    %129 = vmatpush1.msra.mxu0 0.0
    %130 = vmatprep.subr.mxu0 0.0
    %131 = vmatpush1.msra.mxu0 0.0
    %132 = vmatprep.subr.mxu0 0.0
    %133 = vmatpush1.msra.mxu0 0.0
    %134 = vmatprep.subr.mxu0 0.0
    %135 = vmatpush1.msra.mxu0 0.0
    %136 = vmatprep.subr.mxu0 0.0
    %137 = vmatpush1.msra.mxu0 0.0
    %138 = vmatprep.subr.mxu0 0.0
    %139 = vmatpush1.msra.mxu0 0.0
    %140 = vmatprep.subr.mxu0 0.0
    %141 = vmatpush1.msra.mxu0 0.0
    %142 = vmatprep.subr.mxu0 0.0
    %143 = vmatpush1.msra.mxu0 0.0
    %144 = vmatprep.subr.mxu0 0.0
    %145 = vmatpush1.msra.mxu0 0.0
    %146 = vmatprep.subr.mxu0 0.0
    %147 = vmatpush1.msra.mxu0 0.0
    %148 = vmatprep.subr.mxu0 0.0
    %149 = vmatpush1.msra.mxu0 0.0
    %150 = vmatprep.subr.mxu0 0.0
    %151 = vmatpush1.msra.mxu0 0.0
    %152 = vmatprep.subr.mxu0 0.0
    %153 = vmatpush1.msra.mxu0 0.0
    %154 = vmatprep.subr.mxu0 0.0
    %155 = vmatpush1.msra.mxu0 0.0
    %156 = vmatprep.subr.mxu0 0.0
    %157 = vmatpush1.msra.mxu0 0.0
    %158 = vmatprep.subr.mxu0 0.0
    %159 = vmatpush1.msra.mxu0 0.0
    %160 = vmatprep.subr.mxu0 0.0
    %161 = vmatpush1.msra.mxu0 0.0
    %162 = vmatprep.subr.mxu0 0.0
    %163 = vmatpush1.msra.mxu0 0.0
    %164 = vmatprep.subr.mxu0 0.0
    %165 = vmatpush1.msra.mxu0 0.0
    %166 = vmatprep.subr.mxu0 0.0
    %167 = vmatpush1.msra.mxu0 0.0
    %168 = vmatprep.subr.mxu0 0.0
    %169 = vmatpush1.msra.mxu0 0.0
    %170 = vmatprep.subr.mxu0 0.0
    %171 = vmatpush1.msra.mxu0 0.0
    %172 = vmatprep.subr.mxu0 0.0
    %173 = vmatpush1.msra.mxu0 0.0
    %174 = vmatprep.subr.mxu0 0.0
    %175 = vmatpush1.msra.mxu0 0.0
    %176 = vmatprep.subr.mxu0 0.0
    %177 = vmatpush1.msra.mxu0 0.0
    %178 = vmatprep.subr.mxu0 0.0
    %179 = vmatpush1.msra.mxu0 0.0
    %180 = vmatprep.mubr.f32.mxu0 0.0
    %181 = vmatmul.mubr.f32.gmra.mrb[0].mxu0 %v34
    %v182 = vpop.f32.mrb[0].mxu0
    %v183 = vadd.f32 0.0, %v182
    %v184 = vpop.f32.mrb[0].mxu0
    %185 = vmatprep.mubr.f32.mxu0 0.0
    %186 = vmatmul.mubr.f32.gmra.mrb[0].mxu0 %v37
    %v187 = vpop.f32.mrb[0].mxu0
    %v188 = vadd.f32 0.0, %v187
    %v189 = vpop.f32.mrb[0].mxu0
    %190 = vdwg.mxu0
    %191 = vst [vmem:[#allocation2] sm:$0xff] %v106
    %192 = vst [vmem:[#allocation2 + $0x8] sm:$0xff] %v108
    %193 = vst [vmem:[#allocation2 + $0x10] sm:$0xff] %v183
    %194 = vst [vmem:[#allocation2 + $0x18] sm:$0xff] %v112
    %195 = vst [vmem:[#allocation2 + $0x20] sm:$0xff] %v114
    %196 = vst [vmem:[#allocation2 + $0x28] sm:$0xff] %v188
    %v197 = vld [vmem:[%s2] sm:$0xff]
    %v198 = vld [vmem:[%s2 + $0x8] sm:$0xff]
    %v199 = vld [vmem:[%s2 + $0x10] sm:$0xff]
    %v200 = vld [vmem:[%s2 + $0x18] sm:$0xff]
    %v201 = vld [vmem:[%s2 + $0x20] sm:$0xff]
    %v202 = vld [vmem:[%s2 + $0x28] sm:$0xff]
    %v203 = vld [vmem:[%s2 + $0x30] sm:$0xff]
    %v204 = vld [vmem:[%s2 + $0x38] sm:$0xff]
    %v205 = vld [vmem:[%s2 + $0x40] sm:$0xff]
    %v206 = vld [vmem:[%s2 + $0x48] sm:$0xff]
    %v207 = vld [vmem:[%s2 + $0x50] sm:$0xff]
    %v208 = vld [vmem:[%s2 + $0x58] sm:$0xff]
    %v209 = vld [vmem:[%s2 + $0x60] sm:$0xff]
    %v210 = vld [vmem:[%s2 + $0x68] sm:$0xff]
    %v211 = vld [vmem:[%s2 + $0x70] sm:$0xff]
    %v212 = vld [vmem:[%s2 + $0x78] sm:$0xff]
    %v213 = vld [vmem:[%s2 + $0x80] sm:$0xff]
    %v214 = vld [vmem:[%s2 + $0x88] sm:$0xff]
    %v215 = vld [vmem:[%s2 + $0x90] sm:$0xff]
    %v216 = vld [vmem:[%s2 + $0x98] sm:$0xff]
    %v217 = vld [vmem:[%s2 + $0xa0] sm:$0xff]
    %v218 = vld [vmem:[%s2 + $0xa8] sm:$0xff]
    %v219 = vld [vmem:[%s2 + $0xb0] sm:$0xff]
    %v220 = vld [vmem:[%s2 + $0xb8] sm:$0xff]
    %v221 = vld [vmem:[%s2 + $0xc0] sm:$0xff]
    %v222 = vld [vmem:[%s2 + $0xc8] sm:$0xff]
    %v223 = vld [vmem:[%s2 + $0xd0] sm:$0xff]
    %v224 = vld [vmem:[%s2 + $0xd8] sm:$0xff]
    %v225 = vld [vmem:[%s2 + $0xe0] sm:$0xff]
    %v226 = vld [vmem:[%s2 + $0xe8] sm:$0xff]
    %v227 = vld [vmem:[%s2 + $0xf0] sm:$0xff]
    %v228 = vld [vmem:[%s2 + $0xf8] sm:$0xff]
    %v229 = vld [vmem:[%s2 + $0x100] sm:$0xff]
    %v230 = vld [vmem:[%s2 + $0x108] sm:$0xff]
    %v231 = vld [vmem:[%s2 + $0x110] sm:$0xff]
    %v232 = vld [vmem:[%s2 + $0x118] sm:$0xff]
    %v233 = vld [vmem:[%s2 + $0x120] sm:$0xff]
    %v234 = vld [vmem:[%s2 + $0x128] sm:$0xff]
    %v235 = vld [vmem:[%s2 + $0x130] sm:$0xff]
    %v236 = vld [vmem:[%s2 + $0x138] sm:$0xff]
    %v237 = vld [vmem:[%s2 + $0x140] sm:$0xff]
    %v238 = vld [vmem:[%s2 + $0x148] sm:$0xff]
    %v239 = vld [vmem:[%s2 + $0x150] sm:$0xff]
    %v240 = vld [vmem:[%s2 + $0x158] sm:$0xff]
    %v241 = vld [vmem:[%s2 + $0x160] sm:$0xff]
    %v242 = vld [vmem:[%s2 + $0x168] sm:$0xff]
    %v243 = vld [vmem:[%s2 + $0x170] sm:$0xff]
    %v244 = vld [vmem:[%s2 + $0x178] sm:$0xff]
    %v245 = vld [vmem:[%s3] sm:$0x7]
    %v246 = vld [vmem:[#allocation2] sm:$0xff]
    %v247 = vld [vmem:[#allocation2 + $0x8] sm:$0xff]
    %v248 = vld [vmem:[#allocation2 + $0x10] sm:$0xff]
    %v250 = vlaneseq
    %v251 = vshrl.u32 %v250, 7
    %v252 = vsub.s32 0, %v251
    %v253 = vrot.slane %v245, %v252
    %v254 = vlaneseq
    %v255 = vshrl.u32 %v254, 7
    %v256 = vsub.s32 1, %v255
    %v257 = vrot.slane %v245, %v256
    %v258 = vlaneseq
    %v259 = vshrl.u32 %v258, 7
    %v260 = vsub.s32 2, %v259
    %v261 = vrot.slane %v245, %v260
    %265 = vmatprep.subr.mxu0 %v198
    %266 = vmatpush1.msra.mxu0 %v197
    %267 = vmatprep.subr.mxu0 %v201
    %268 = vmatpush1.msra.mxu0 %v200
    %269 = vmatprep.subr.mxu0 %v204
    %270 = vmatpush1.msra.mxu0 %v203
    %271 = vmatprep.subr.mxu0 %v207
    %272 = vmatpush1.msra.mxu0 %v206
    %273 = vmatprep.subr.mxu0 %v210
    %274 = vmatpush1.msra.mxu0 %v209
    %275 = vmatprep.subr.mxu0 %v213
    %276 = vmatpush1.msra.mxu0 %v212
    %277 = vmatprep.subr.mxu0 %v216
    %278 = vmatpush1.msra.mxu0 %v215
    %279 = vmatprep.subr.mxu0 %v219
    %280 = vmatpush1.msra.mxu0 %v218
    %281 = vmatprep.subr.mxu0 %v222
    %282 = vmatpush1.msra.mxu0 %v221
    %283 = vmatprep.subr.mxu0 %v225
    %284 = vmatpush1.msra.mxu0 %v224
    %285 = vmatprep.subr.mxu0 %v228
    %286 = vmatpush1.msra.mxu0 %v227
    %287 = vmatprep.subr.mxu0 %v231
    %288 = vmatpush1.msra.mxu0 %v230
    %289 = vmatprep.subr.mxu0 %v234
    %290 = vmatpush1.msra.mxu0 %v233
    %291 = vmatprep.subr.mxu0 %v237
    %292 = vmatpush1.msra.mxu0 %v236
    %293 = vmatprep.subr.mxu0 %v240
    %294 = vmatpush1.msra.mxu0 %v239
    %295 = vmatprep.subr.mxu0 %v243
    %296 = vmatpush1.msra.mxu0 %v242
    %297 = vmatprep.subr.mxu0 0.0
    %298 = vmatpush1.msra.mxu0 0.0
    %299 = vmatprep.subr.mxu0 0.0
    %300 = vmatpush1.msra.mxu0 0.0
    %301 = vmatprep.subr.mxu0 0.0
    %302 = vmatpush1.msra.mxu0 0.0
    %303 = vmatprep.subr.mxu0 0.0
    %304 = vmatpush1.msra.mxu0 0.0
    %305 = vmatprep.subr.mxu0 0.0
    %306 = vmatpush1.msra.mxu0 0.0
    %307 = vmatprep.subr.mxu0 0.0
    %308 = vmatpush1.msra.mxu0 0.0
    %309 = vmatprep.subr.mxu0 0.0
    %310 = vmatpush1.msra.mxu0 0.0
    %311 = vmatprep.subr.mxu0 0.0
    %312 = vmatpush1.msra.mxu0 0.0
    %313 = vmatprep.subr.mxu0 0.0
    %314 = vmatpush1.msra.mxu0 0.0
    %315 = vmatprep.subr.mxu0 0.0
    %316 = vmatpush1.msra.mxu0 0.0
    %317 = vmatprep.subr.mxu0 0.0
    %318 = vmatpush1.msra.mxu0 0.0
    %319 = vmatprep.subr.mxu0 0.0
    %320 = vmatpush1.msra.mxu0 0.0
    %321 = vmatprep.subr.mxu0 0.0
    %322 = vmatpush1.msra.mxu0 0.0
    %323 = vmatprep.subr.mxu0 0.0
    %324 = vmatpush1.msra.mxu0 0.0
    %325 = vmatprep.subr.mxu0 0.0
    %326 = vmatpush1.msra.mxu0 0.0
    %327 = vmatprep.subr.mxu0 0.0
    %328 = vmatpush1.msra.mxu0 0.0
    %329 = vmatprep.mubr.f32.mxu0 0.0
    %330 = vmatmul.mubr.f32.gmra.mrb[0].mxu0 0.0
    %v331 = vpop.f32.mrb[0].mxu0
    %v332 = vadd.f32 %v253, %v331
    %v333 = vpop.f32.mrb[0].mxu0
    %v334 = vadd.f32 %v257, %v333
    %335 = vdwg.mxu0
    %336 = vmatprep.subr.mxu0 0.0
    %337 = vmatpush1.msra.mxu0 %v199
    %338 = vmatprep.subr.mxu0 0.0
    %339 = vmatpush1.msra.mxu0 %v202
    %340 = vmatprep.subr.mxu0 0.0
    %341 = vmatpush1.msra.mxu0 %v205
    %342 = vmatprep.subr.mxu0 0.0
    %343 = vmatpush1.msra.mxu0 %v208
    %344 = vmatprep.subr.mxu0 0.0
    %345 = vmatpush1.msra.mxu0 %v211
    %346 = vmatprep.subr.mxu0 0.0
    %347 = vmatpush1.msra.mxu0 %v214
    %348 = vmatprep.subr.mxu0 0.0
    %349 = vmatpush1.msra.mxu0 %v217
    %350 = vmatprep.subr.mxu0 0.0
    %351 = vmatpush1.msra.mxu0 %v220
    %352 = vmatprep.subr.mxu0 0.0
    %353 = vmatpush1.msra.mxu0 %v223
    %354 = vmatprep.subr.mxu0 0.0
    %355 = vmatpush1.msra.mxu0 %v226
    %356 = vmatprep.subr.mxu0 0.0
    %357 = vmatpush1.msra.mxu0 %v229
    %358 = vmatprep.subr.mxu0 0.0
    %359 = vmatpush1.msra.mxu0 %v232
    %360 = vmatprep.subr.mxu0 0.0
    %361 = vmatpush1.msra.mxu0 %v235
    %362 = vmatprep.subr.mxu0 0.0
    %363 = vmatpush1.msra.mxu0 %v238
    %364 = vmatprep.subr.mxu0 0.0
    %365 = vmatpush1.msra.mxu0 %v241
    %366 = vmatprep.subr.mxu0 0.0
    %367 = vmatpush1.msra.mxu0 %v244
    %368 = vmatprep.subr.mxu0 0.0
    %369 = vmatpush1.msra.mxu0 0.0
    %370 = vmatprep.subr.mxu0 0.0
    %371 = vmatpush1.msra.mxu0 0.0
    %372 = vmatprep.subr.mxu0 0.0
    %373 = vmatpush1.msra.mxu0 0.0
    %374 = vmatprep.subr.mxu0 0.0
    %375 = vmatpush1.msra.mxu0 0.0
    %376 = vmatprep.subr.mxu0 0.0
    %377 = vmatpush1.msra.mxu0 0.0
    %378 = vmatprep.subr.mxu0 0.0
    %379 = vmatpush1.msra.mxu0 0.0
    %380 = vmatprep.subr.mxu0 0.0
    %381 = vmatpush1.msra.mxu0 0.0
    %382 = vmatprep.subr.mxu0 0.0
    %383 = vmatpush1.msra.mxu0 0.0
    %384 = vmatprep.subr.mxu0 0.0
    %385 = vmatpush1.msra.mxu0 0.0
    %386 = vmatprep.subr.mxu0 0.0
    %387 = vmatpush1.msra.mxu0 0.0
    %388 = vmatprep.subr.mxu0 0.0
    %389 = vmatpush1.msra.mxu0 0.0
    %390 = vmatprep.subr.mxu0 0.0
    %391 = vmatpush1.msra.mxu0 0.0
    %392 = vmatprep.subr.mxu0 0.0
    %393 = vmatpush1.msra.mxu0 0.0
    %394 = vmatprep.subr.mxu0 0.0
    %395 = vmatpush1.msra.mxu0 0.0
    %396 = vmatprep.subr.mxu0 0.0
    %397 = vmatpush1.msra.mxu0 0.0
    %398 = vmatprep.subr.mxu0 0.0
    %399 = vmatpush1.msra.mxu0 0.0
    %400 = vmatprep.mubr.f32.mxu0 0.0
    %401 = vmatmul.mubr.f32.gmra.mrb[0].mxu0 0.0
    %v402 = vpop.f32.mrb[0].mxu0
    %v403 = vadd.f32 %v261, %v402
    %v404 = vpop.f32.mrb[0].mxu0
    %405 = vdwg.mxu0
    %v406 = vadd.f32 %v246, %v332
    %v407 = vxor.u32 %v406, 2147483648
    %v408 = vmul.f32 %v407, 1.442695
    %v409 = vpow.pop %v408
    %v410 = vadd.f32 %v409, 1.0
    %v411 = vrcp.pop %v410
    %v412 = vmul.f32 1.0, %v411
    %v413 = vadd.f32 %v247, %v334
    %v414 = vxor.u32 %v413, 2147483648
    %v415 = vmul.f32 %v414, 1.442695
    %v416 = vpow.pop %v415
    %v417 = vadd.f32 %v416, 1.0
    %v418 = vrcp.pop %v417
    %v419 = vmul.f32 1.0, %v418
    %v420 = vmul.f32 %v412, %v403
    %v421 = vadd.f32 %v248, %v420
    %v422 = vtanh.pop %v421
    %v423 = vsub.f32 1.0, %v419
    %v424 = vmul.f32 %v423, %v422
    %v425 = vmul.f32 %v419, 0.0
    %v426 = vadd.f32 %v424, %v425
    %vm427 = vcmask 1043456
    %v428 = vsel %vm427, %v426, 0.0
    %v429 = vrot.slane %v428, 4
    %v430 = vadd.f32 %v428, %v429
    %v431 = vrot.slane %v430, 2
    %v432 = vadd.f32 %v430, %v431
    %v433 = vrot.slane %v432, 1
    %v434 = vadd.f32 %v432, %v433
    %v435 = vmul.f32 %v434, 0.25
    %436 = vst [vmem:[#allocation3] sm:$0x1] %v435
    %437 = vst [vmem:[#allocation4 + $0x1] sm:$0x1] %v435
    %v438 = vld [vmem:[#allocation2 + $0x18] sm:$0xff]
    %v439 = vld [vmem:[#allocation2 + $0x20] sm:$0xff]
    %v440 = vld [vmem:[#allocation2 + $0x28] sm:$0xff]
    %441 = vmatprep.subr.mxu0 %v198
    %442 = vmatpush1.msra.mxu0 %v197
    %443 = vmatprep.subr.mxu0 %v201
    %444 = vmatpush1.msra.mxu0 %v200
    %445 = vmatprep.subr.mxu0 %v204
    %446 = vmatpush1.msra.mxu0 %v203
    %447 = vmatprep.subr.mxu0 %v207
    %448 = vmatpush1.msra.mxu0 %v206
    %449 = vmatprep.subr.mxu0 %v210
    %450 = vmatpush1.msra.mxu0 %v209
    %451 = vmatprep.subr.mxu0 %v213
    %452 = vmatpush1.msra.mxu0 %v212
    %453 = vmatprep.subr.mxu0 %v216
    %454 = vmatpush1.msra.mxu0 %v215
    %455 = vmatprep.subr.mxu0 %v219
    %456 = vmatpush1.msra.mxu0 %v218
    %457 = vmatprep.subr.mxu0 %v222
    %458 = vmatpush1.msra.mxu0 %v221
    %459 = vmatprep.subr.mxu0 %v225
    %460 = vmatpush1.msra.mxu0 %v224
    %461 = vmatprep.subr.mxu0 %v228
    %462 = vmatpush1.msra.mxu0 %v227
    %463 = vmatprep.subr.mxu0 %v231
    %464 = vmatpush1.msra.mxu0 %v230
    %465 = vmatprep.subr.mxu0 %v234
    %466 = vmatpush1.msra.mxu0 %v233
    %467 = vmatprep.subr.mxu0 %v237
    %468 = vmatpush1.msra.mxu0 %v236
    %469 = vmatprep.subr.mxu0 %v240
    %470 = vmatpush1.msra.mxu0 %v239
    %471 = vmatprep.subr.mxu0 %v243
    %472 = vmatpush1.msra.mxu0 %v242
    %473 = vmatprep.subr.mxu0 0.0
    %474 = vmatpush1.msra.mxu0 0.0
    %475 = vmatprep.subr.mxu0 0.0
    %476 = vmatpush1.msra.mxu0 0.0
    %477 = vmatprep.subr.mxu0 0.0
    %478 = vmatpush1.msra.mxu0 0.0
    %479 = vmatprep.subr.mxu0 0.0
    %480 = vmatpush1.msra.mxu0 0.0
    %481 = vmatprep.subr.mxu0 0.0
    %482 = vmatpush1.msra.mxu0 0.0
    %483 = vmatprep.subr.mxu0 0.0
    %484 = vmatpush1.msra.mxu0 0.0
    %485 = vmatprep.subr.mxu0 0.0
    %486 = vmatpush1.msra.mxu0 0.0
    %487 = vmatprep.subr.mxu0 0.0
    %488 = vmatpush1.msra.mxu0 0.0
    %489 = vmatprep.subr.mxu0 0.0
    %490 = vmatpush1.msra.mxu0 0.0
    %491 = vmatprep.subr.mxu0 0.0
    %492 = vmatpush1.msra.mxu0 0.0
    %493 = vmatprep.subr.mxu0 0.0
    %494 = vmatpush1.msra.mxu0 0.0
    %495 = vmatprep.subr.mxu0 0.0
    %496 = vmatpush1.msra.mxu0 0.0
    %497 = vmatprep.subr.mxu0 0.0
    %498 = vmatpush1.msra.mxu0 0.0
    %499 = vmatprep.subr.mxu0 0.0
    %500 = vmatpush1.msra.mxu0 0.0
    %501 = vmatprep.subr.mxu0 0.0
    %502 = vmatpush1.msra.mxu0 0.0
    %503 = vmatprep.subr.mxu0 0.0
    %504 = vmatpush1.msra.mxu0 0.0
    %505 = vmatprep.mubr.f32.mxu0 0.0
    %506 = vmatmul.mubr.f32.gmra.mrb[0].mxu0 %v426
    %v507 = vpop.f32.mrb[0].mxu0
    %v508 = vadd.f32 %v253, %v507
    %v509 = vpop.f32.mrb[0].mxu0
    %v510 = vadd.f32 %v257, %v509
    %511 = vdwg.mxu0
    %512 = vmatprep.subr.mxu0 0.0
    %513 = vmatpush1.msra.mxu0 %v199
    %514 = vmatprep.subr.mxu0 0.0
    %515 = vmatpush1.msra.mxu0 %v202
    %516 = vmatprep.subr.mxu0 0.0
    %517 = vmatpush1.msra.mxu0 %v205
    %518 = vmatprep.subr.mxu0 0.0
    %519 = vmatpush1.msra.mxu0 %v208
    %520 = vmatprep.subr.mxu0 0.0
    %521 = vmatpush1.msra.mxu0 %v211
    %522 = vmatprep.subr.mxu0 0.0
    %523 = vmatpush1.msra.mxu0 %v214
    %524 = vmatprep.subr.mxu0 0.0
    %525 = vmatpush1.msra.mxu0 %v217
    %526 = vmatprep.subr.mxu0 0.0
    %527 = vmatpush1.msra.mxu0 %v220
    %528 = vmatprep.subr.mxu0 0.0
    %529 = vmatpush1.msra.mxu0 %v223
    %530 = vmatprep.subr.mxu0 0.0
    %531 = vmatpush1.msra.mxu0 %v226
    %532 = vmatprep.subr.mxu0 0.0
    %533 = vmatpush1.msra.mxu0 %v229
    %534 = vmatprep.subr.mxu0 0.0
    %535 = vmatpush1.msra.mxu0 %v232
    %536 = vmatprep.subr.mxu0 0.0
    %537 = vmatpush1.msra.mxu0 %v235
    %538 = vmatprep.subr.mxu0 0.0
    %539 = vmatpush1.msra.mxu0 %v238
    %540 = vmatprep.subr.mxu0 0.0
    %541 = vmatpush1.msra.mxu0 %v241
    %542 = vmatprep.subr.mxu0 0.0
    %543 = vmatpush1.msra.mxu0 %v244
    %544 = vmatprep.subr.mxu0 0.0
    %545 = vmatpush1.msra.mxu0 0.0
    %546 = vmatprep.subr.mxu0 0.0
    %547 = vmatpush1.msra.mxu0 0.0
    %548 = vmatprep.subr.mxu0 0.0
    %549 = vmatpush1.msra.mxu0 0.0
    %550 = vmatprep.subr.mxu0 0.0
    %551 = vmatpush1.msra.mxu0 0.0
    %552 = vmatprep.subr.mxu0 0.0
    %553 = vmatpush1.msra.mxu0 0.0
    %554 = vmatprep.subr.mxu0 0.0
    %555 = vmatpush1.msra.mxu0 0.0
    %556 = vmatprep.subr.mxu0 0.0
    %557 = vmatpush1.msra.mxu0 0.0
    %558 = vmatprep.subr.mxu0 0.0
    %559 = vmatpush1.msra.mxu0 0.0
    %560 = vmatprep.subr.mxu0 0.0
    %561 = vmatpush1.msra.mxu0 0.0
    %562 = vmatprep.subr.mxu0 0.0
    %563 = vmatpush1.msra.mxu0 0.0
    %564 = vmatprep.subr.mxu0 0.0
    %565 = vmatpush1.msra.mxu0 0.0
    %566 = vmatprep.subr.mxu0 0.0
    %567 = vmatpush1.msra.mxu0 0.0
    %568 = vmatprep.subr.mxu0 0.0
    %569 = vmatpush1.msra.mxu0 0.0
    %570 = vmatprep.subr.mxu0 0.0
    %571 = vmatpush1.msra.mxu0 0.0
    %572 = vmatprep.subr.mxu0 0.0
    %573 = vmatpush1.msra.mxu0 0.0
    %574 = vmatprep.subr.mxu0 0.0
    %575 = vmatpush1.msra.mxu0 0.0
    %576 = vmatprep.mubr.f32.mxu0 0.0
    %577 = vmatmul.mubr.f32.gmra.mrb[0].mxu0 %v426
    %v578 = vpop.f32.mrb[0].mxu0
    %v579 = vadd.f32 %v261, %v578
    %v580 = vpop.f32.mrb[0].mxu0
    %581 = vdwg.mxu0
    %v582 = vadd.f32 %v438, %v508
    %v583 = vxor.u32 %v582, 2147483648
    %v584 = vmul.f32 %v583, 1.442695
    %v585 = vpow.pop %v584
    %v586 = vadd.f32 %v585, 1.0
    %v587 = vrcp.pop %v586
    %v588 = vmul.f32 1.0, %v587
    %v589 = vadd.f32 %v439, %v510
    %v590 = vxor.u32 %v589, 2147483648
    %v591 = vmul.f32 %v590, 1.442695
    %v592 = vpow.pop %v591
    %v593 = vadd.f32 %v592, 1.0
    %v594 = vrcp.pop %v593
    %v595 = vmul.f32 1.0, %v594
    %v596 = vmul.f32 %v588, %v579
    %v597 = vadd.f32 %v440, %v596
    %v598 = vtanh.pop %v597
    %v599 = vsub.f32 1.0, %v595
    %v600 = vmul.f32 %v599, %v598
    %v601 = vmul.f32 %v595, %v426
    %v602 = vadd.f32 %v600, %v601
    %v603 = vsel %vm427, %v602, 0.0
    %v604 = vrot.slane %v603, 4
    %v605 = vadd.f32 %v603, %v604
    %v606 = vrot.slane %v605, 2
    %v607 = vadd.f32 %v605, %v606
    %v608 = vrot.slane %v607, 1
    %v609 = vadd.f32 %v607, %v608
    %v610 = vmul.f32 %v609, 0.25
    %611 = vst [vmem:[#allocation3 + $0x1] sm:$0x1] %v610
    %612 = vst [vmem:[#allocation4] sm:$0x1] %v610
    %v613 = vlaneseq
    %v614 = vand.u32 %v613, 127
    %vm615 = vcmp.lt.s32.totalorder %v614, 8
    %v616 = vld [vmem:[#allocation3] sm:$0x3]
    %v617 = vld [vmem:[#allocation4] sm:$0x3]
    %v618 = vsel %vm615, %v616, %v617
    %vm619 = vcmask 123904
    %620 = vst.msk [vmem:[#allocation5] sm:$0x3] %vm619, %v618
    // Predicated region
    $region18: #{feature_extractor_forward.1} parent=1 // pred_check
      _
    $region19: #{feature_extractor_forward.1} parent=1 // pred_check_branch
      %622 = sbr.rel (0) target = $region21
    $region20: #{feature_extractor_forward.1} parent=1 // pred_region
      %s624 = ssub.s32 32, 32
      %625 = vsyncadd [#allocation6], %s624
      %s627 = sshll.u32 [#allocation5], 4
      %s628 = int_to_ptr.vmem [resolvable:$true] %s627
      %630 = dma.vmem_to_hbm [thread:$0]  %s628, 32, %s4, [#allocation6]
    $region21: #{feature_extractor_forward.1} parent=1 // pred_fallthru
      _
    // Predicated region
    $region22: #{feature_extractor_forward.1} parent=1 // pred_check
      _
    $region23: #{feature_extractor_forward.1} parent=1 // pred_check_branch
      %632 = sbr.rel (0) target = $region25
    $region24: #{feature_extractor_forward.1} parent=1 // pred_region
      %633 = dma.done [#allocation6], 32
    $region25: #{feature_extractor_forward.1} parent=1 // pred_fallthru
      _
    %634 = vsyncpa [#allocation6], 1

</llo_original>
